<compile_context>
chip_gen: v6e
topology: v6e:2x2x1
jax: 0.10.0
libtpu: 0.0.40
codegen_flags: <defaults>
</compile_context>

<pallas_src>
import jax
import jax.numpy as jnp
from jax.experimental import pallas as pl
from jax.experimental.pallas import tpu as pltpu

_HIDDEN = 64
_HID_PAD = 128  # hidden kept 128-lane so h1/h2 vregs are lane-dense (free: weights resident)


def _round_up(x, m):
    return (x + m - 1) // m * m


def forward_model_kernel(z_ref, a_ref, w1z_ref, w1a_ref, b1_ref,
                         w2_ref, b2_ref, w3_ref, b3_ref, out_ref):
    # Layer 1: split dot over the logical concat(z, a) -> two MXU pushes, no padded
    # activation stream. Operands are cast to the (possibly bf16) weight dtype; the
    # accumulation and the bias+ReLU elementwise path stay f32.
    zd = z_ref[...].astype(w1z_ref.dtype)
    ad = a_ref[...].astype(w1a_ref.dtype)
    h1 = (jnp.dot(zd, w1z_ref[...], preferred_element_type=jnp.float32)
          + jnp.dot(ad, w1a_ref[...], preferred_element_type=jnp.float32)
          + b1_ref[...])
    h1 = jnp.maximum(h1, 0.0)
    # Layer 2.
    h2 = jnp.dot(h1.astype(w2_ref.dtype), w2_ref[...],
                 preferred_element_type=jnp.float32) + b2_ref[...]
    h2 = jnp.maximum(h2, 0.0)
    # Layer 3 -> true-width output tile (stored directly, no lane padding).
    out = jnp.dot(h2.astype(w3_ref.dtype), w3_ref[...],
                  preferred_element_type=jnp.float32) + b3_ref[...]
    out_ref[...] = out.astype(out_ref.dtype)


def prepare_params(params, *, dot_dtype=jnp.float32):
    """One-time packing of the nn.Linear parameters for the kernel.

    Splits W1 into its z / a halves (so no activation concat is needed), pads only the
    hidden dim to 128 lanes (inert: zero weight rows/cols + zero bias + ReLU(0)=0), and
    casts matmul operands to dot_dtype. Biases stay f32 (f32 VPU add/ReLU on all chips).
    Call once and reuse across rollout steps — this keeps six pad/scatter XLA ops out of
    every forward call.
    """
    w1, b1 = params["w1"], params["b1"]
    w2, b2 = params["w2"], params["b2"]
    w3, b3 = params["w3"], params["b3"]
    latent_dim = w3.shape[1]
    in_dim = w1.shape[0]
    action_dim = in_dim - latent_dim
    hid = w1.shape[1]
    assert hid == _HIDDEN
    # TODO(synk): support action_dim == 0 (Linear/SimpleMLP configs without actions would
    # drop the second layer-1 dot); the CFM MLP config always has actions.
    assert action_dim > 0

    w1z = jnp.zeros((latent_dim, _HID_PAD), dot_dtype).at[:, :hid].set(
        w1[:latent_dim].astype(dot_dtype))
    w1a = jnp.zeros((action_dim, _HID_PAD), dot_dtype).at[:, :hid].set(
        w1[latent_dim:].astype(dot_dtype))
    w2p = jnp.zeros((_HID_PAD, _HID_PAD), dot_dtype).at[:hid, :hid].set(
        w2.astype(dot_dtype))
    w3p = jnp.zeros((_HID_PAD, latent_dim), dot_dtype).at[:hid, :].set(
        w3.astype(dot_dtype))
    b1p = jnp.zeros((1, _HID_PAD), jnp.float32).at[:, :hid].set(b1.astype(jnp.float32))
    b2p = jnp.zeros((1, _HID_PAD), jnp.float32).at[:, :hid].set(b2.astype(jnp.float32))
    b3p = b3.astype(jnp.float32).reshape(1, latent_dim)
    return {"w1z": w1z, "w1a": w1a, "b1": b1p,
            "w2": w2p, "b2": b2p, "w3": w3p, "b3": b3p}


def forward_model(z, a, params, *, dot_dtype=None, block_rows=1024):
    """Pallas implementation of ForwardModel.forward (ComplexityLevel.MLP).

    params: either raw {"w1".."b3"} nn.Linear params (packed on the fly) or the output of
            prepare_params() (preferred — pack once, reuse every step).
    dot_dtype: matmul-operand dtype. Defaults to z.dtype (exact match to the PyTorch f32
            module). jnp.bfloat16 is recommended for production on v5e/v6e/v7x (mem-bound
            regime: halves the dominant byte streams; accumulation stays f32).
    block_rows: max batch rows per grid step (multiple of 8).
    """
    if "w1z" not in params:  # raw params passed -> pack here (prefer prepare_params once)
        params = prepare_params(params, dot_dtype=(dot_dtype or z.dtype))
    w1z, w1a, b1 = params["w1z"], params["w1a"], params["b1"]
    w2, b2, w3, b3 = params["w2"], params["b2"], params["w3"], params["b3"]

    B, latent_dim = z.shape
    action_dim = a.shape[-1]
    assert w1z.shape[0] == latent_dim and w1a.shape[0] == action_dim
    out_dtype = z.dtype

    # Batch tiling: single step for tiny batches (overhead-bound), otherwise >= 2 grid
    # steps (keeps both v7x TensorCores busy) capped at block_rows. Ragged last block is
    # handled by Pallas (masked writeback) — no explicit row padding.
    rows8 = _round_up(max(B, 1), 8)
    if rows8 <= 256:
        tm = rows8
    else:
        tm = min(block_rows, _round_up(pl.cdiv(rows8, 2), 8))
    grid = (pl.cdiv(B, tm),)

    resident = lambda arr: pl.BlockSpec(arr.shape, lambda i: (0, 0))

    flops = 2 * B * (latent_dim * _HIDDEN + action_dim * _HIDDEN
                     + _HIDDEN * _HIDDEN + _HIDDEN * latent_dim)
    bytes_accessed = int(
        z.size * z.dtype.itemsize + a.size * a.dtype.itemsize
        + B * latent_dim * jnp.dtype(out_dtype).itemsize
        + sum(int(t.size) * t.dtype.itemsize for t in (w1z, w1a, b1, w2, b2, w3, b3)))

    return pl.pallas_call(
        forward_model_kernel,
        out_shape=jax.ShapeDtypeStruct((B, latent_dim), out_dtype),
        grid=grid,
        in_specs=[
            pl.BlockSpec((tm, latent_dim), lambda i: (i, 0)),   # z: true width
            pl.BlockSpec((tm, action_dim), lambda i: (i, 0)),   # a: true width
            resident(w1z), resident(w1a), resident(b1),
            resident(w2), resident(b2), resident(w3), resident(b3),
        ],
        out_specs=pl.BlockSpec((tm, latent_dim), lambda i: (i, 0)),  # true-width output
        compiler_params=pltpu.CompilerParams(dimension_semantics=("parallel",)),
        cost_estimate=pl.CostEstimate(flops=flops, transcendentals=0,
                                      bytes_accessed=bytes_accessed),
    )(z, a, w1z, w1a, b1, w2, b2, w3, b3)


def init_params(key, latent_dim, action_dim, hidden=_HIDDEN, dtype=jnp.float32):
    """Deterministic init matching nn.Linear shapes (uniform +-1/sqrt(fan_in))."""
    ks = jax.random.split(key, 6)
    d_in = latent_dim + action_dim

    def lin(kw, kb, fan_in, fan_out):
        bound = 1.0 / jnp.sqrt(fan_in)
        w = jax.random.uniform(kw, (fan_in, fan_out), dtype, -bound, bound)
        b = jax.random.uniform(kb, (fan_out,), dtype, -bound, bound)
        return w, b

    w1, b1 = lin(ks[0], ks[1], d_in, hidden)
    w2, b2 = lin(ks[2], ks[3], hidden, hidden)
    w3, b3 = lin(ks[4], ks[5], hidden, latent_dim)
    return {"w1": w1, "b1": b1, "w2": w2, "b2": b2, "w3": w3, "b3": b3}


def forward_model_ref(z, a, params):
    """Pure-JAX reference for correctness checking."""
    x = jnp.concatenate([z, a], axis=-1)
    x = jnp.maximum(x @ params["w1"] + params["b1"], 0.0)
    x = jnp.maximum(x @ params["w2"] + params["b2"], 0.0)
    return x @ params["w3"] + params["b3"]


if __name__ == "__main__":
    latent_dim = 32
    action_dim = 8

    key = jax.random.PRNGKey(0)
    kz, ka, kp = jax.random.split(key, 3)
    params = init_params(kp, latent_dim, action_dim)
    prepped = prepare_params(params)  # one-time param packing (f32 dot operands)

    # 1) Small batch: single grid step, exact f32 semantics.
    B0 = 8
    z0 = jax.random.normal(kz, (B0, latent_dim), jnp.float32)
    a0 = jax.random.normal(ka, (B0, action_dim), jnp.float32)
    out0 = jax.block_until_ready(forward_model(z0, a0, prepped))
    ref0 = forward_model_ref(z0, a0, params)
    assert out0.shape == (B0, latent_dim)
    assert jnp.allclose(out0, ref0, atol=1e-5, rtol=1e-5), "small-batch mismatch"

    # 2) Larger ragged batch: multi-step grid + partial trailing block.
    B1 = 1000
    z1 = jax.random.normal(kz, (B1, latent_dim), jnp.float32)
    a1 = jax.random.normal(ka, (B1, action_dim), jnp.float32)
    out1 = jax.block_until_ready(forward_model(z1, a1, prepped, block_rows=256))
    ref1 = forward_model_ref(z1, a1, params)
    assert out1.shape == (B1, latent_dim)
    assert jnp.allclose(out1, ref1, atol=1e-5, rtol=1e-5), "ragged-batch mismatch"

    # 3) bf16 dot operands (recommended production mode): f32 accumulation, loose tol.
    prepped_bf16 = prepare_params(params, dot_dtype=jnp.bfloat16)
    out_bf = jax.block_until_ready(forward_model(z1, a1, prepped_bf16, block_rows=256))
    assert jnp.allclose(out_bf, ref1, atol=1e-1, rtol=1e-1), "bf16 mismatch"

    print("KERNEL_OK")
</pallas_src>

<mosaic_0001>
module attributes {stable_mosaic.version = 11 : i64} {
  func.func @forward_model_kernel(%arg0: i32, %arg1: memref<8x32xf32, #tpu.memory_space<vmem>>, %arg2: memref<8x8xf32, #tpu.memory_space<vmem>>, %arg3: memref<32x128xf32, #tpu.memory_space<vmem>>, %arg4: memref<8x128xf32, #tpu.memory_space<vmem>>, %arg5: memref<1x128xf32, #tpu.memory_space<vmem>>, %arg6: memref<128x128xf32, #tpu.memory_space<vmem>>, %arg7: memref<1x128xf32, #tpu.memory_space<vmem>>, %arg8: memref<128x32xf32, #tpu.memory_space<vmem>>, %arg9: memref<1x32xf32, #tpu.memory_space<vmem>>, %arg10: memref<8x32xf32, #tpu.memory_space<vmem>>) attributes {dimension_semantics = [#tpu.dimension_semantics<parallel>], iteration_bounds = array<i64: 1>, scalar_prefetch = 0 : i64, scratch_operands = 0 : i64, tpu.core_type = #tpu.core_type<tc>, window_params = [{transform_indices = @transform_0, window_bounds = array<i64: 8, 32>}, {transform_indices = @transform_1, window_bounds = array<i64: 8, 8>}, {pipeline_mode = #tpu.pipeline_mode<synchronous>, transform_indices = @transform_2, window_bounds = array<i64: 32, 128>}, {pipeline_mode = #tpu.pipeline_mode<synchronous>, transform_indices = @transform_3, window_bounds = array<i64: 8, 128>}, {pipeline_mode = #tpu.pipeline_mode<synchronous>, transform_indices = @transform_4, window_bounds = array<i64: 1, 128>}, {pipeline_mode = #tpu.pipeline_mode<synchronous>, transform_indices = @transform_5, window_bounds = array<i64: 128, 128>}, {pipeline_mode = #tpu.pipeline_mode<synchronous>, transform_indices = @transform_6, window_bounds = array<i64: 1, 128>}, {pipeline_mode = #tpu.pipeline_mode<synchronous>, transform_indices = @transform_7, window_bounds = array<i64: 128, 32>}, {pipeline_mode = #tpu.pipeline_mode<synchronous>, transform_indices = @transform_8, window_bounds = array<i64: 1, 32>}, {transform_indices = @transform_9, window_bounds = array<i64: 8, 32>}]} {
    %c0 = arith.constant 0 : index
    %c0_0 = arith.constant 0 : index
    %0 = vector.load %arg1[%c0, %c0_0] : memref<8x32xf32, #tpu.memory_space<vmem>>, vector<8x32xf32>
    %c0_1 = arith.constant 0 : index
    %c0_2 = arith.constant 0 : index
    %1 = vector.load %arg2[%c0_1, %c0_2] : memref<8x8xf32, #tpu.memory_space<vmem>>, vector<8x8xf32>
    %c0_3 = arith.constant 0 : index
    %c0_4 = arith.constant 0 : index
    %2 = vector.load %arg3[%c0_3, %c0_4] : memref<32x128xf32, #tpu.memory_space<vmem>>, vector<32x128xf32>
    %cst = arith.constant dense<0.000000e+00> : vector<8x128xf32>
    %3 = tpu.matmul %0, %2, %cst {dimension_numbers = #tpu.dot_dimension_numbers<[1], [0], [0], [1], [0, 0, 1, 1], [], []>} : vector<8x32xf32>, vector<32x128xf32>, vector<8x128xf32> -> vector<8x128xf32>
    %c0_5 = arith.constant 0 : index
    %c0_6 = arith.constant 0 : index
    %4 = vector.load %arg4[%c0_5, %c0_6] : memref<8x128xf32, #tpu.memory_space<vmem>>, vector<8x128xf32>
    %cst_7 = arith.constant dense<0.000000e+00> : vector<8x128xf32>
    %5 = tpu.matmul %1, %4, %cst_7 {dimension_numbers = #tpu.dot_dimension_numbers<[1], [0], [0], [1], [0, 0, 1, 1], [], []>} : vector<8x8xf32>, vector<8x128xf32>, vector<8x128xf32> -> vector<8x128xf32>
    %6 = arith.addf %3, %5 : vector<8x128xf32>
    %c0_8 = arith.constant 0 : index
    %c0_9 = arith.constant 0 : index
    %7 = vector.load %arg5[%c0_8, %c0_9] : memref<1x128xf32, #tpu.memory_space<vmem>>, vector<1x128xf32>
    %8 = vector.broadcast %7 : vector<1x128xf32> to vector<8x128xf32>
    %9 = arith.addf %6, %8 : vector<8x128xf32>
    %cst_10 = arith.constant 0.000000e+00 : f32
    %10 = vector.broadcast %cst_10 : f32 to vector<8x128xf32>
    %11 = arith.maximumf %9, %10 : vector<8x128xf32>
    %c0_11 = arith.constant 0 : index
    %c0_12 = arith.constant 0 : index
    %12 = vector.load %arg6[%c0_11, %c0_12] : memref<128x128xf32, #tpu.memory_space<vmem>>, vector<128x128xf32>
    %cst_13 = arith.constant dense<0.000000e+00> : vector<8x128xf32>
    %13 = tpu.matmul %11, %12, %cst_13 {dimension_numbers = #tpu.dot_dimension_numbers<[1], [0], [0], [1], [0, 0, 1, 1], [], []>} : vector<8x128xf32>, vector<128x128xf32>, vector<8x128xf32> -> vector<8x128xf32>
    %c0_14 = arith.constant 0 : index
    %c0_15 = arith.constant 0 : index
    %14 = vector.load %arg7[%c0_14, %c0_15] : memref<1x128xf32, #tpu.memory_space<vmem>>, vector<1x128xf32>
    %15 = vector.broadcast %14 : vector<1x128xf32> to vector<8x128xf32>
    %16 = arith.addf %13, %15 : vector<8x128xf32>
    %cst_16 = arith.constant 0.000000e+00 : f32
    %17 = vector.broadcast %cst_16 : f32 to vector<8x128xf32>
    %18 = arith.maximumf %16, %17 : vector<8x128xf32>
    %c0_17 = arith.constant 0 : index
    %c0_18 = arith.constant 0 : index
    %19 = vector.load %arg8[%c0_17, %c0_18] : memref<128x32xf32, #tpu.memory_space<vmem>>, vector<128x32xf32>
    %cst_19 = arith.constant dense<0.000000e+00> : vector<8x32xf32>
    %20 = tpu.matmul %18, %19, %cst_19 {dimension_numbers = #tpu.dot_dimension_numbers<[1], [0], [0], [1], [0, 0, 1, 1], [], []>} : vector<8x128xf32>, vector<128x32xf32>, vector<8x32xf32> -> vector<8x32xf32>
    %c0_20 = arith.constant 0 : index
    %c0_21 = arith.constant 0 : index
    %21 = vector.load %arg9[%c0_20, %c0_21] : memref<1x32xf32, #tpu.memory_space<vmem>>, vector<1x32xf32>
    %22 = vector.broadcast %21 : vector<1x32xf32> to vector<8x32xf32>
    %23 = arith.addf %20, %22 : vector<8x32xf32>
    %c0_22 = arith.constant 0 : index
    %c0_23 = arith.constant 0 : index
    %24 = vector.load %arg10[%c0_22, %c0_23] : memref<8x32xf32, #tpu.memory_space<vmem>>, vector<8x32xf32>
    tpu.vector_store %arg10[%c0_22, %c0_23], %23 {strides = array<i32>} : memref<8x32xf32, #tpu.memory_space<vmem>>, vector<8x32xf32>,
    return
  }
  func.func @transform_0(%arg0: i32) -> (i32, i32) {
    %c0_i32 = arith.constant 0 : i32
    %c0_i32_0 = arith.constant 0 : i32
    return %arg0, %c0_i32 : i32, i32
  }
  func.func @transform_1(%arg0: i32) -> (i32, i32) {
    %c0_i32 = arith.constant 0 : i32
    %c0_i32_0 = arith.constant 0 : i32
    return %arg0, %c0_i32 : i32, i32
  }
  func.func @transform_2(%arg0: i32) -> (i32, i32) {
    %c0_i32 = arith.constant 0 : i32
    %c0_i32_0 = arith.constant 0 : i32
    %c0_i32_1 = arith.constant 0 : i32
    return %c0_i32, %c0_i32_0 : i32, i32
  }
  func.func @transform_3(%arg0: i32) -> (i32, i32) {
    %c0_i32 = arith.constant 0 : i32
    %c0_i32_0 = arith.constant 0 : i32
    %c0_i32_1 = arith.constant 0 : i32
    return %c0_i32, %c0_i32_0 : i32, i32
  }
  func.func @transform_4(%arg0: i32) -> (i32, i32) {
    %c0_i32 = arith.constant 0 : i32
    %c0_i32_0 = arith.constant 0 : i32
    %c0_i32_1 = arith.constant 0 : i32
    return %c0_i32, %c0_i32_0 : i32, i32
  }
  func.func @transform_5(%arg0: i32) -> (i32, i32) {
    %c0_i32 = arith.constant 0 : i32
    %c0_i32_0 = arith.constant 0 : i32
    %c0_i32_1 = arith.constant 0 : i32
    return %c0_i32, %c0_i32_0 : i32, i32
  }
  func.func @transform_6(%arg0: i32) -> (i32, i32) {
    %c0_i32 = arith.constant 0 : i32
    %c0_i32_0 = arith.constant 0 : i32
    %c0_i32_1 = arith.constant 0 : i32
    return %c0_i32, %c0_i32_0 : i32, i32
  }
  func.func @transform_7(%arg0: i32) -> (i32, i32) {
    %c0_i32 = arith.constant 0 : i32
    %c0_i32_0 = arith.constant 0 : i32
    %c0_i32_1 = arith.constant 0 : i32
    return %c0_i32, %c0_i32_0 : i32, i32
  }
  func.func @transform_8(%arg0: i32) -> (i32, i32) {
    %c0_i32 = arith.constant 0 : i32
    %c0_i32_0 = arith.constant 0 : i32
    %c0_i32_1 = arith.constant 0 : i32
    return %c0_i32, %c0_i32_0 : i32, i32
  }
  func.func @transform_9(%arg0: i32) -> (i32, i32) {
    %c0_i32 = arith.constant 0 : i32
    %c0_i32_0 = arith.constant 0 : i32
    return %arg0, %c0_i32 : i32, i32
  }
}

</mosaic_0001>

<llo_original>
// kernel: tpu_custom_call.1
$region0: #{tpu_custom_call.1}
  #allocation0 [shape = 'u32[]', space=smem, size = 0x4, offset = 0x4, fixed_abs, tag = 'smem constant byte address 0x4 - core index']
  #allocation1 [shape = 'u32[144,128]{1,0:T(1,128)}', space=vmem, size = 0x12000, scoped, tag = 'internal scratch']
  %s0 = inlined_call_operand.vmem [shape: f32[8,32], index: 0, kind: input, shape index: {}]
  %s1 = inlined_call_operand.hbm [shape: f32[8,8], index: 1, kind: input, shape index: {}]
  %s2 = inlined_call_operand.vmem [shape: f32[32,128], index: 2, kind: input, shape index: {}]
  %s3 = inlined_call_operand.hbm [shape: f32[8,128], index: 3, kind: input, shape index: {}]
  %s4 = inlined_call_operand.vmem [shape: f32[1,128], index: 4, kind: input, shape index: {}]
  %s5 = inlined_call_operand.vmem [shape: f32[128,128], index: 5, kind: input, shape index: {}]
  %s6 = inlined_call_operand.vmem [shape: f32[1,128], index: 6, kind: input, shape index: {}]
  %s7 = inlined_call_operand.vmem [shape: f32[128,32], index: 7, kind: input, shape index: {}]
  %s8 = inlined_call_operand.vmem [shape: f32[1,32], index: 8, kind: input, shape index: {}]
  %s9 = inlined_call_operand.hbm [shape: f32[8,32], index: 9, kind: output, shape index: {}]
  %s10 = sld [smem:[#allocation0]]
  $region54: #{tpu_custom_call.1} parent=0
    _
  %s12 = ssub.s32 1, %s10
  %s13 = scalar_select 0, %s12, %s10
  $region1: #{tpu_custom_call.1} parent=0
    #allocation2 [shape = 'u8[4096]{0}', space=vmem, size = 0x1000, scoped, tag = 'input window, operand 1, single buffered']
    #allocation3 [shape = 's32[1]{0}', space=sflag, size = 0x4, scoped, tag = 'scoped memory for tpu_custom_call.1']
    #allocation4 [shape = 's32[1]{0}', space=sflag, size = 0x4, scoped, tag = 'scoped memory for tpu_custom_call.1']
    #allocation5 [shape = 'u8[4096]{0}', space=vmem, size = 0x1000, scoped, tag = 'input window, operand 3, single buffered']
    #allocation6 [shape = 's32[1]{0}', space=sflag, size = 0x4, scoped, tag = 'scoped memory for tpu_custom_call.1']
    #allocation7 [shape = 'u8[4096]{0}', space=vmem, size = 0x1000, scoped, tag = 'output window, operand 0, single buffered']
    %14 = vsyncpa [#allocation3], 0
    %15 = vsyncpa [#allocation6], 0
    %16 = vsyncpa [#allocation4], 0
    // Predicated region
    $region2: #{tpu_custom_call.1} parent=1 // pred_check
      _
    $region3: #{tpu_custom_call.1} parent=1 // pred_check_branch
      %18 = sbr.rel (0) target = $region5
    $region4: #{tpu_custom_call.1} parent=1 // pred_region
      _
    $region5: #{tpu_custom_call.1} parent=1 // pred_fallthru
      _
    // Predicated region
    $region6: #{tpu_custom_call.1} parent=1 // pred_check
      _
    $region7: #{tpu_custom_call.1} parent=1 // pred_check_branch
      %20 = sbr.rel (0) target = $region9
    $region8: #{tpu_custom_call.1} parent=1 // pred_region
      %s22 = ssub.s32 128, 128
      %23 = vsyncadd [#allocation3], %s22
      %s25 = sshll.u32 [#allocation2], 4
      %s26 = int_to_ptr.vmem [resolvable:$true] %s25
      %28 = dma.hbm_to_vmem [thread:$0]  %s1, 128, %s26, [#allocation3]
    $region9: #{tpu_custom_call.1} parent=1 // pred_fallthru
      _
    // Predicated region
    $region10: #{tpu_custom_call.1} parent=1 // pred_check
      _
    $region11: #{tpu_custom_call.1} parent=1 // pred_check_branch
      %30 = sbr.rel (0) target = $region13
    $region12: #{tpu_custom_call.1} parent=1 // pred_region
      _
    $region13: #{tpu_custom_call.1} parent=1 // pred_fallthru
      _
    // Predicated region
    $region14: #{tpu_custom_call.1} parent=1 // pred_check
      _
    $region15: #{tpu_custom_call.1} parent=1 // pred_check_branch
      %32 = sbr.rel (0) target = $region17
    $region16: #{tpu_custom_call.1} parent=1 // pred_region
      %s34 = ssub.s32 128, 128
      %35 = vsyncadd [#allocation6], %s34
      %s37 = sshll.u32 [#allocation5], 4
      %s38 = int_to_ptr.vmem [resolvable:$true] %s37
      %40 = dma.hbm_to_vmem [thread:$0]  %s3, 128, %s38, [#allocation6]
    $region17: #{tpu_custom_call.1} parent=1 // pred_fallthru
      _
    // Predicated region
    $region18: #{tpu_custom_call.1} parent=1 // pred_check
      _
    $region19: #{tpu_custom_call.1} parent=1 // pred_check_branch
      %42 = sbr.rel (0) target = $region21
    $region20: #{tpu_custom_call.1} parent=1 // pred_region
      _
    $region21: #{tpu_custom_call.1} parent=1 // pred_fallthru
      _
    // Predicated region
    $region22: #{tpu_custom_call.1} parent=1 // pred_check
      _
    $region23: #{tpu_custom_call.1} parent=1 // pred_check_branch
      %44 = sbr.rel (0) target = $region25
    $region24: #{tpu_custom_call.1} parent=1 // pred_region
      _
    $region25: #{tpu_custom_call.1} parent=1 // pred_fallthru
      _
    // Predicated region
    $region26: #{tpu_custom_call.1} parent=1 // pred_check
      _
    $region27: #{tpu_custom_call.1} parent=1 // pred_check_branch
      %46 = sbr.rel (0) target = $region29
    $region28: #{tpu_custom_call.1} parent=1 // pred_region
      _
    $region29: #{tpu_custom_call.1} parent=1 // pred_fallthru
      _
    // Predicated region
    $region30: #{tpu_custom_call.1} parent=1 // pred_check
      _
    $region31: #{tpu_custom_call.1} parent=1 // pred_check_branch
      %48 = sbr.rel (0) target = $region33
    $region32: #{tpu_custom_call.1} parent=1 // pred_region
      _
    $region33: #{tpu_custom_call.1} parent=1 // pred_fallthru
      _
    // Predicated region
    $region34: #{tpu_custom_call.1} parent=1 // pred_check
      _
    $region35: #{tpu_custom_call.1} parent=1 // pred_check_branch
      %50 = sbr.rel (0) target = $region37
    $region36: #{tpu_custom_call.1} parent=1 // pred_region
      _
    $region37: #{tpu_custom_call.1} parent=1 // pred_fallthru
      _
    // Predicated region
    $region38: #{tpu_custom_call.1} parent=1 // pred_check
      _
    $region39: #{tpu_custom_call.1} parent=1 // pred_check_branch
      %52 = sbr.rel (0) target = $region41
    $region40: #{tpu_custom_call.1} parent=1 // pred_region
      %53 = dma.done [#allocation3], 128
    $region41: #{tpu_custom_call.1} parent=1 // pred_fallthru
      _
    // Predicated region
    $region42: #{tpu_custom_call.1} parent=1 // pred_check
      _
    $region43: #{tpu_custom_call.1} parent=1 // pred_check_branch
      %55 = sbr.rel (0) target = $region45
    $region44: #{tpu_custom_call.1} parent=1 // pred_region
      %56 = dma.done [#allocation6], 128
    $region45: #{tpu_custom_call.1} parent=1 // pred_fallthru
      _
    %v57 = vld [vmem:[%s0] sm:$0xff]
    %v58 = vld [vmem:[#allocation2] sm:$0xff]
    %v59 = vld [vmem:[%s2] sm:$0xff]
    %v60 = vld [vmem:[%s2 + $0x8] sm:$0xff]
    %v61 = vld [vmem:[%s2 + $0x10] sm:$0xff]
    %v62 = vld [vmem:[%s2 + $0x18] sm:$0xff]
    %v63 = vld [vmem:[#allocation5] sm:$0xff]
    %vm64 = vcmask 64512
    %v66 = vsel %vm64, %v58, 0
    %68 = vmatprep.subr.mxu0 0.0
    %69 = vmatpush1.msra.mxu0 0.0
    %70 = vmatprep.subr.mxu0 0.0
    %71 = vmatpush1.msra.mxu0 0.0
    %72 = vmatprep.subr.mxu0 0.0
    %73 = vmatpush1.msra.mxu0 0.0
    %74 = vmatprep.subr.mxu0 0.0
    %75 = vmatpush1.msra.mxu0 0.0
    %76 = vmatprep.subr.mxu0 0.0
    %77 = vmatpush1.msra.mxu0 0.0
    %78 = vmatprep.subr.mxu0 0.0
    %79 = vmatpush1.msra.mxu0 0.0
    %80 = vmatprep.subr.mxu0 0.0
    %81 = vmatpush1.msra.mxu0 0.0
    %82 = vmatprep.subr.mxu0 0.0
    %83 = vmatpush1.msra.mxu0 0.0
    %84 = vmatprep.subr.mxu0 0.0
    %85 = vmatpush1.msra.mxu0 0.0
    %86 = vmatprep.subr.mxu0 0.0
    %87 = vmatpush1.msra.mxu0 0.0
    %88 = vmatprep.subr.mxu0 0.0
    %89 = vmatpush1.msra.mxu0 0.0
    %90 = vmatprep.subr.mxu0 0.0
    %91 = vmatpush1.msra.mxu0 0.0
    %92 = vmatprep.subr.mxu0 0.0
    %93 = vmatpush1.msra.mxu0 0.0
    %94 = vmatprep.subr.mxu0 0.0
    %95 = vmatpush1.msra.mxu0 0.0
    %96 = vmatprep.subr.mxu0 0.0
    %97 = vmatpush1.msra.mxu0 0.0
    %98 = vmatprep.subr.mxu0 0.0
    %99 = vmatpush1.msra.mxu0 %v63
    %100 = vmatprep.subr.mxu0 0.0
    %101 = vmatpush2.msra.mxu0 0.0
    %102 = vmatprep.subr.mxu0 0.0
    %103 = vmatpush2.msra.mxu0 0.0
    %104 = vmatprep.subr.mxu0 0.0
    %105 = vmatpush2.msra.mxu0 0.0
    %106 = vmatprep.subr.mxu0 0.0
    %107 = vmatpush2.msra.mxu0 0.0
    %108 = vmatprep.subr.mxu0 0.0
    %109 = vmatpush2.msra.mxu0 0.0
    %110 = vmatprep.subr.mxu0 0.0
    %111 = vmatpush2.msra.mxu0 0.0
    %112 = vmatprep.subr.mxu0 0.0
    %113 = vmatpush2.msra.mxu0 0.0
    %114 = vmatprep.subr.mxu0 0.0
    %115 = vmatpush2.msra.mxu0 0.0
    %116 = vmatprep.subr.mxu0 0.0
    %117 = vmatpush2.msra.mxu0 0.0
    %118 = vmatprep.subr.mxu0 0.0
    %119 = vmatpush2.msra.mxu0 0.0
    %120 = vmatprep.subr.mxu0 0.0
    %121 = vmatpush2.msra.mxu0 0.0
    %122 = vmatprep.subr.mxu0 0.0
    %123 = vmatpush2.msra.mxu0 0.0
    %124 = vmatprep.subr.mxu0 0.0
    %125 = vmatpush2.msra.mxu0 0.0
    %126 = vmatprep.subr.mxu0 0.0
    %127 = vmatpush2.msra.mxu0 0.0
    %128 = vmatprep.subr.mxu0 0.0
    %129 = vmatpush2.msra.mxu0 0.0
    %130 = vmatprep.subr.mxu0 0.0
    %131 = vmatpush2.msra.mxu0 0.0
    %132 = vmatprep.mubr.f32.mxu0 0.0
    %133 = vmatmul.mubr.f32.gmra.mxu0 %v66
    %v134 = vpop.f32.mrf.mxu0
    %v135 = vadd.f32 0.0, %v134
    %v136 = vpop.f32.mrf.mxu0
    %137 = vdwg.mxu0
    %vm138 = vcmask 261120
    %v140 = vsel %vm138, %v57, 0
    %142 = vmatprep.subr.mxu0 0.0
    %143 = vmatpush1.msra.mxu0 0.0
    %144 = vmatprep.subr.mxu0 0.0
    %145 = vmatpush1.msra.mxu0 0.0
    %146 = vmatprep.subr.mxu0 0.0
    %147 = vmatpush1.msra.mxu0 0.0
    %148 = vmatprep.subr.mxu0 0.0
    %149 = vmatpush1.msra.mxu0 0.0
    %150 = vmatprep.subr.mxu0 0.0
    %151 = vmatpush1.msra.mxu0 0.0
    %152 = vmatprep.subr.mxu0 0.0
    %153 = vmatpush1.msra.mxu0 0.0
    %154 = vmatprep.subr.mxu0 0.0
    %155 = vmatpush1.msra.mxu0 0.0
    %156 = vmatprep.subr.mxu0 0.0
    %157 = vmatpush1.msra.mxu0 0.0
    %158 = vmatprep.subr.mxu0 0.0
    %159 = vmatpush1.msra.mxu0 0.0
    %160 = vmatprep.subr.mxu0 0.0
    %161 = vmatpush1.msra.mxu0 0.0
    %162 = vmatprep.subr.mxu0 0.0
    %163 = vmatpush1.msra.mxu0 0.0
    %164 = vmatprep.subr.mxu0 0.0
    %165 = vmatpush1.msra.mxu0 0.0
    %166 = vmatprep.subr.mxu0 0.0
    %167 = vmatpush1.msra.mxu0 %v62
    %168 = vmatprep.subr.mxu0 0.0
    %169 = vmatpush1.msra.mxu0 %v61
    %170 = vmatprep.subr.mxu0 0.0
    %171 = vmatpush1.msra.mxu0 %v60
    %172 = vmatprep.subr.mxu0 0.0
    %173 = vmatpush1.msra.mxu0 %v59
    %174 = vmatprep.subr.mxu0 0.0
    %175 = vmatpush2.msra.mxu0 0.0
    %176 = vmatprep.subr.mxu0 0.0
    %177 = vmatpush2.msra.mxu0 0.0
    %178 = vmatprep.subr.mxu0 0.0
    %179 = vmatpush2.msra.mxu0 0.0
    %180 = vmatprep.subr.mxu0 0.0
    %181 = vmatpush2.msra.mxu0 0.0
    %182 = vmatprep.subr.mxu0 0.0
    %183 = vmatpush2.msra.mxu0 0.0
    %184 = vmatprep.subr.mxu0 0.0
    %185 = vmatpush2.msra.mxu0 0.0
    %186 = vmatprep.subr.mxu0 0.0
    %187 = vmatpush2.msra.mxu0 0.0
    %188 = vmatprep.subr.mxu0 0.0
    %189 = vmatpush2.msra.mxu0 0.0
    %190 = vmatprep.subr.mxu0 0.0
    %191 = vmatpush2.msra.mxu0 0.0
    %192 = vmatprep.subr.mxu0 0.0
    %193 = vmatpush2.msra.mxu0 0.0
    %194 = vmatprep.subr.mxu0 0.0
    %195 = vmatpush2.msra.mxu0 0.0
    %196 = vmatprep.subr.mxu0 0.0
    %197 = vmatpush2.msra.mxu0 0.0
    %198 = vmatprep.subr.mxu0 0.0
    %199 = vmatpush2.msra.mxu0 0.0
    %200 = vmatprep.subr.mxu0 0.0
    %201 = vmatpush2.msra.mxu0 0.0
    %202 = vmatprep.subr.mxu0 0.0
    %203 = vmatpush2.msra.mxu0 0.0
    %204 = vmatprep.subr.mxu0 0.0
    %205 = vmatpush2.msra.mxu0 0.0
    %206 = vmatprep.mubr.f32.mxu0 0.0
    %207 = vmatmul.mubr.f32.gmra.mxu0 %v140
    %v208 = vpop.f32.mrf.mxu0
    %v209 = vadd.f32 %v135, %v208
    %v210 = vpop.f32.mrf.mxu0
    %211 = vdwg.mxu0
    %v212 = vld [vmem:[%s4] sm:$0x1]
    %v214 = vlaneseq
    %v215 = vshrl.u32 %v214, 7
    %v216 = vsub.s32 0, %v215
    %v217 = vrot.slane %v212, %v216
    %v219 = vadd.f32 %v209, %v217
    %v220 = vmax.f32 %v219, 0.0
    %v221 = vld [vmem:[%s5] sm:$0xff]
    %v222 = vld [vmem:[%s5 + $0x8] sm:$0xff]
    %v223 = vld [vmem:[%s5 + $0x10] sm:$0xff]
    %v224 = vld [vmem:[%s5 + $0x18] sm:$0xff]
    %v225 = vld [vmem:[%s5 + $0x20] sm:$0xff]
    %v226 = vld [vmem:[%s5 + $0x28] sm:$0xff]
    %v227 = vld [vmem:[%s5 + $0x30] sm:$0xff]
    %v228 = vld [vmem:[%s5 + $0x38] sm:$0xff]
    %v229 = vld [vmem:[%s5 + $0x40] sm:$0xff]
    %v230 = vld [vmem:[%s5 + $0x48] sm:$0xff]
    %v231 = vld [vmem:[%s5 + $0x50] sm:$0xff]
    %v232 = vld [vmem:[%s5 + $0x58] sm:$0xff]
    %v233 = vld [vmem:[%s5 + $0x60] sm:$0xff]
    %v234 = vld [vmem:[%s5 + $0x68] sm:$0xff]
    %v235 = vld [vmem:[%s5 + $0x70] sm:$0xff]
    %v236 = vld [vmem:[%s5 + $0x78] sm:$0xff]
    %v237 = vld [vmem:[%s6] sm:$0x1]
    %v239 = vlaneseq
    %v240 = vshrl.u32 %v239, 7
    %v241 = vsub.s32 0, %v240
    %v242 = vrot.slane %v237, %v241
    %244 = vmatprep.subr.mxu0 0.0
    %245 = vmatpush1.msra.mxu0 %v236
    %246 = vmatprep.subr.mxu0 0.0
    %247 = vmatpush1.msra.mxu0 %v235
    %248 = vmatprep.subr.mxu0 0.0
    %249 = vmatpush1.msra.mxu0 %v234
    %250 = vmatprep.subr.mxu0 0.0
    %251 = vmatpush1.msra.mxu0 %v233
    %252 = vmatprep.subr.mxu0 0.0
    %253 = vmatpush1.msra.mxu0 %v232
    %254 = vmatprep.subr.mxu0 0.0
    %255 = vmatpush1.msra.mxu0 %v231
    %256 = vmatprep.subr.mxu0 0.0
    %257 = vmatpush1.msra.mxu0 %v230
    %258 = vmatprep.subr.mxu0 0.0
    %259 = vmatpush1.msra.mxu0 %v229
    %260 = vmatprep.subr.mxu0 0.0
    %261 = vmatpush1.msra.mxu0 %v228
    %262 = vmatprep.subr.mxu0 0.0
    %263 = vmatpush1.msra.mxu0 %v227
    %264 = vmatprep.subr.mxu0 0.0
    %265 = vmatpush1.msra.mxu0 %v226
    %266 = vmatprep.subr.mxu0 0.0
    %267 = vmatpush1.msra.mxu0 %v225
    %268 = vmatprep.subr.mxu0 0.0
    %269 = vmatpush1.msra.mxu0 %v224
    %270 = vmatprep.subr.mxu0 0.0
    %271 = vmatpush1.msra.mxu0 %v223
    %272 = vmatprep.subr.mxu0 0.0
    %273 = vmatpush1.msra.mxu0 %v222
    %274 = vmatprep.subr.mxu0 0.0
    %275 = vmatpush1.msra.mxu0 %v221
    %276 = vmatprep.subr.mxu0 0.0
    %277 = vmatpush2.msra.mxu0 0.0
    %278 = vmatprep.subr.mxu0 0.0
    %279 = vmatpush2.msra.mxu0 0.0
    %280 = vmatprep.subr.mxu0 0.0
    %281 = vmatpush2.msra.mxu0 0.0
    %282 = vmatprep.subr.mxu0 0.0
    %283 = vmatpush2.msra.mxu0 0.0
    %284 = vmatprep.subr.mxu0 0.0
    %285 = vmatpush2.msra.mxu0 0.0
    %286 = vmatprep.subr.mxu0 0.0
    %287 = vmatpush2.msra.mxu0 0.0
    %288 = vmatprep.subr.mxu0 0.0
    %289 = vmatpush2.msra.mxu0 0.0
    %290 = vmatprep.subr.mxu0 0.0
    %291 = vmatpush2.msra.mxu0 0.0
    %292 = vmatprep.subr.mxu0 0.0
    %293 = vmatpush2.msra.mxu0 0.0
    %294 = vmatprep.subr.mxu0 0.0
    %295 = vmatpush2.msra.mxu0 0.0
    %296 = vmatprep.subr.mxu0 0.0
    %297 = vmatpush2.msra.mxu0 0.0
    %298 = vmatprep.subr.mxu0 0.0
    %299 = vmatpush2.msra.mxu0 0.0
    %300 = vmatprep.subr.mxu0 0.0
    %301 = vmatpush2.msra.mxu0 0.0
    %302 = vmatprep.subr.mxu0 0.0
    %303 = vmatpush2.msra.mxu0 0.0
    %304 = vmatprep.subr.mxu0 0.0
    %305 = vmatpush2.msra.mxu0 0.0
    %306 = vmatprep.subr.mxu0 0.0
    %307 = vmatpush2.msra.mxu0 0.0
    %308 = vmatprep.mubr.f32.mxu0 0.0
    %309 = vmatmul.mubr.f32.gmra.mxu0 %v220
    %v310 = vpop.f32.mrf.mxu0
    %v311 = vadd.f32 %v242, %v310
    %v312 = vpop.f32.mrf.mxu0
    %313 = vdwg.mxu0
    %v314 = vmax.f32 %v311, 0.0
    %v315 = vld [vmem:[%s7] sm:$0xff]
    %v316 = vld [vmem:[%s7 + $0x8] sm:$0xff]
    %v317 = vld [vmem:[%s7 + $0x10] sm:$0xff]
    %v318 = vld [vmem:[%s7 + $0x18] sm:$0xff]
    %v319 = vld [vmem:[%s7 + $0x20] sm:$0xff]
    %v320 = vld [vmem:[%s7 + $0x28] sm:$0xff]
    %v321 = vld [vmem:[%s7 + $0x30] sm:$0xff]
    %v322 = vld [vmem:[%s7 + $0x38] sm:$0xff]
    %v323 = vld [vmem:[%s7 + $0x40] sm:$0xff]
    %v324 = vld [vmem:[%s7 + $0x48] sm:$0xff]
    %v325 = vld [vmem:[%s7 + $0x50] sm:$0xff]
    %v326 = vld [vmem:[%s7 + $0x58] sm:$0xff]
    %v327 = vld [vmem:[%s7 + $0x60] sm:$0xff]
    %v328 = vld [vmem:[%s7 + $0x68] sm:$0xff]
    %v329 = vld [vmem:[%s7 + $0x70] sm:$0xff]
    %v330 = vld [vmem:[%s7 + $0x78] sm:$0xff]
    %v331 = vld [vmem:[%s8] sm:$0x1]
    %v333 = vlaneseq
    %v334 = vshrl.u32 %v333, 7
    %v335 = vsub.s32 0, %v334
    %v336 = vrot.slane %v331, %v335
    %338 = vmatprep.subr.mxu0 0.0
    %339 = vmatpush1.msra.mxu0 %v330
    %340 = vmatprep.subr.mxu0 0.0
    %341 = vmatpush1.msra.mxu0 %v329
    %342 = vmatprep.subr.mxu0 0.0
    %343 = vmatpush1.msra.mxu0 %v328
    %344 = vmatprep.subr.mxu0 0.0
    %345 = vmatpush1.msra.mxu0 %v327
    %346 = vmatprep.subr.mxu0 0.0
    %347 = vmatpush1.msra.mxu0 %v326
    %348 = vmatprep.subr.mxu0 0.0
    %349 = vmatpush1.msra.mxu0 %v325
    %350 = vmatprep.subr.mxu0 0.0
    %351 = vmatpush1.msra.mxu0 %v324
    %352 = vmatprep.subr.mxu0 0.0
    %353 = vmatpush1.msra.mxu0 %v323
    %354 = vmatprep.subr.mxu0 0.0
    %355 = vmatpush1.msra.mxu0 %v322
    %356 = vmatprep.subr.mxu0 0.0
    %357 = vmatpush1.msra.mxu0 %v321
    %358 = vmatprep.subr.mxu0 0.0
    %359 = vmatpush1.msra.mxu0 %v320
    %360 = vmatprep.subr.mxu0 0.0
    %361 = vmatpush1.msra.mxu0 %v319
    %362 = vmatprep.subr.mxu0 0.0
    %363 = vmatpush1.msra.mxu0 %v318
    %364 = vmatprep.subr.mxu0 0.0
    %365 = vmatpush1.msra.mxu0 %v317
    %366 = vmatprep.subr.mxu0 0.0
    %367 = vmatpush1.msra.mxu0 %v316
    %368 = vmatprep.subr.mxu0 0.0
    %369 = vmatpush1.msra.mxu0 %v315
    %370 = vmatprep.subr.mxu0 0.0
    %371 = vmatpush2.msra.mxu0 0.0
    %372 = vmatprep.subr.mxu0 0.0
    %373 = vmatpush2.msra.mxu0 0.0
    %374 = vmatprep.subr.mxu0 0.0
    %375 = vmatpush2.msra.mxu0 0.0
    %376 = vmatprep.subr.mxu0 0.0
    %377 = vmatpush2.msra.mxu0 0.0
    %378 = vmatprep.subr.mxu0 0.0
    %379 = vmatpush2.msra.mxu0 0.0
    %380 = vmatprep.subr.mxu0 0.0
    %381 = vmatpush2.msra.mxu0 0.0
    %382 = vmatprep.subr.mxu0 0.0
    %383 = vmatpush2.msra.mxu0 0.0
    %384 = vmatprep.subr.mxu0 0.0
    %385 = vmatpush2.msra.mxu0 0.0
    %386 = vmatprep.subr.mxu0 0.0
    %387 = vmatpush2.msra.mxu0 0.0
    %388 = vmatprep.subr.mxu0 0.0
    %389 = vmatpush2.msra.mxu0 0.0
    %390 = vmatprep.subr.mxu0 0.0
    %391 = vmatpush2.msra.mxu0 0.0
    %392 = vmatprep.subr.mxu0 0.0
    %393 = vmatpush2.msra.mxu0 0.0
    %394 = vmatprep.subr.mxu0 0.0
    %395 = vmatpush2.msra.mxu0 0.0
    %396 = vmatprep.subr.mxu0 0.0
    %397 = vmatpush2.msra.mxu0 0.0
    %398 = vmatprep.subr.mxu0 0.0
    %399 = vmatpush2.msra.mxu0 0.0
    %400 = vmatprep.subr.mxu0 0.0
    %401 = vmatpush2.msra.mxu0 0.0
    %402 = vmatprep.mubr.f32.mxu0 0.0
    %403 = vmatmul.mubr.f32.gmra.mxu0 %v314
    %v404 = vpop.f32.mrf.mxu0
    %v405 = vadd.f32 %v336, %v404
    %v406 = vpop.f32.mrf.mxu0
    %407 = vdwg.mxu0
    %408 = vst.msk [vmem:[#allocation7] sm:$0xff] %vm138, %v405
    // Predicated region
    $region46: #{tpu_custom_call.1} parent=1 // pred_check
      _
    $region47: #{tpu_custom_call.1} parent=1 // pred_check_branch
      %410 = sbr.rel (0) target = $region49
    $region48: #{tpu_custom_call.1} parent=1 // pred_region
      %s412 = ssub.s32 128, 128
      %413 = vsyncadd [#allocation4], %s412
      %s415 = sshll.u32 [#allocation7], 4
      %s416 = int_to_ptr.vmem [resolvable:$true] %s415
      %418 = dma.vmem_to_hbm [thread:$0]  %s416, 128, %s9, [#allocation4]
    $region49: #{tpu_custom_call.1} parent=1 // pred_fallthru
      _
    // Predicated region
    $region50: #{tpu_custom_call.1} parent=1 // pred_check
      _
    $region51: #{tpu_custom_call.1} parent=1 // pred_check_branch
      %420 = sbr.rel (0) target = $region53
    $region52: #{tpu_custom_call.1} parent=1 // pred_region
      %421 = dma.done [#allocation4], 128
    $region53: #{tpu_custom_call.1} parent=1 // pred_fallthru
      _
    %422 = vsyncpa [#allocation3], 1
    %423 = vsyncpa [#allocation6], 1
    %424 = vsyncpa [#allocation4], 1

</llo_original>
